<compile_context>
chip_gen: v7x
topology: tpu7x:2x2x1
jax: 0.10.0
libtpu: 0.0.40
codegen_flags: <defaults>
</compile_context>

<pallas_src>
import functools

import jax
import jax.numpy as jnp
from jax.experimental import pallas as pl
from jax.experimental.pallas import tpu as pltpu

_LANE = 128
_MIN_KERNEL_ELEMS = 65536                 # below this XLA's fused elementwise wins
_COL_CANDIDATES = (8192, 4096, 2048, 1024, 512, 256, 128)


def _device_kind() -> str:
    try:
        return jax.devices()[0].device_kind.lower()
    except Exception:
        return ""


def _vmem_capacity_bytes() -> int:
    try:
        cap = int(pltpu.get_tpu_info().vmem_capacity_bytes)
        if cap > 0:
            return cap
    except Exception:
        pass
    kind = _device_kind()
    if any(t in kind for t in ("v4", "v5", "v6")):
        return 128 * 1024 * 1024
    return 64 * 1024 * 1024               # conservative: v7x per-TC VMEM


def _native_bf16_ok() -> bool:
    # v6e / v7x have bf16 VPU+EUP paths; v5e and older do not.
    kind = _device_kind()
    return ("v6" in kind) or ("v7" in kind)


def _exp_kernel(a_ref, b_ref, x_ref, o_ref, *, compute_dtype):
    # a_ref / b_ref are (1, 1) f32 scalars in SMEM; x_ref / o_ref are VMEM tiles.
    a = a_ref[0, 0].astype(compute_dtype)
    b = b_ref[0, 0].astype(compute_dtype)
    x = x_ref[...].astype(compute_dtype)   # no-op for f32; bf16 stays bf16 on v6e/v7x
    o_ref[...] = (a * jnp.exp(b * x)).astype(o_ref.dtype)


def exp_model_forward(x: jax.Array, a: jax.Array, b: jax.Array,
                      *, min_kernel_elems: int = _MIN_KERNEL_ELEMS) -> jax.Array:
    """Computes a * exp(b * x) elementwise with a Pallas TPU kernel.

    Accepts any shape/size (like the PyTorch module). The last grid block may
    be ragged: Pallas masks the out-of-bounds writes, and computing exp on the
    padded garbage rows is harmless for this elementwise op (it would NOT be
    safe for a reduction).
    """
    orig_shape = x.shape
    orig_dtype = x.dtype
    n = int(x.size)

    # Tiny / empty inputs: kernel launch + per-step overhead dominates; let XLA
    # fuse the elementwise op instead.
    if n < max(1, min_kernel_elems):
        a_f = jnp.asarray(a, jnp.float32)
        b_f = jnp.asarray(b, jnp.float32)
        return (a_f * jnp.exp(b_f * x.astype(jnp.float32))).astype(orig_dtype)

    itemsize = jnp.dtype(orig_dtype).itemsize
    sublane = {4: 8, 2: 16, 1: 32}.get(itemsize, 8)   # dtype-aware packing

    # --- lane-dense 2D layout (avoid any pad copy when possible) -------------
    cols = None
    for c in _COL_CANDIDATES:
        if n >= c and n % c == 0:
            cols = c
            break
    needs_pad = cols is None
    if needs_pad:
        cols = _LANE                       # fall back; pad is < 1 lane row
    rows = pl.cdiv(n, cols)
    padded_n = rows * cols

    x_flat = jnp.ravel(x)
    if needs_pad and padded_n != n:
        # Sub-row tail pad only; hit only when no candidate width divides n.
        x_flat = jnp.pad(x_flat, (0, padded_n - n))
    x2d = x_flat.reshape(rows, cols)

    # --- compute dtype: native bf16 on v6e/v7x, f32 upcast elsewhere ---------
    if orig_dtype == jnp.bfloat16 and _native_bf16_ok():
        compute_dtype = jnp.bfloat16
    else:
        compute_dtype = jnp.float32

    # --- generation-aware tile / VMEM budget ----------------------------------
    vmem_cap = _vmem_capacity_bytes()
    # 16 MiB blocks on 128 MiB-VMEM parts (v5e/v6e), 8 MiB on v7x (64 MiB/TC).
    target_block_bytes = min(16 * 1024 * 1024, vmem_cap // 8)
    vmem_limit = int(max(32 * 1024 * 1024,
                         min(vmem_cap - 16 * 1024 * 1024, 96 * 1024 * 1024)))

    eff_itemsize = max(itemsize, jnp.dtype(compute_dtype).itemsize)
    tile_r = max(sublane,
                 (target_block_bytes // (cols * eff_itemsize)) // sublane * sublane)

    # Guarantee a multi-step grid on arrays >= ~1 MiB so double-buffering can
    # overlap DMA/compute and v7x can shard rows across its two TensorCores.
    if n * itemsize >= (1 << 20):
        tile_r_split = max(sublane, (rows // 4) // sublane * sublane)
        tile_r = min(tile_r, tile_r_split)

    if rows <= tile_r:
        tile_r = rows                      # single full-extent block (exempt from 8x128 rule)

    grid = (pl.cdiv(rows, tile_r),)        # ragged final block handled by masking

    cost = pl.CostEstimate(
        flops=2 * padded_n,
        transcendentals=padded_n,
        bytes_accessed=2 * padded_n * itemsize,
    )

    kernel = functools.partial(_exp_kernel, compute_dtype=compute_dtype)
    a2 = jnp.asarray(a, jnp.float32).reshape(1, 1)
    b2 = jnp.asarray(b, jnp.float32).reshape(1, 1)

    out2d = pl.pallas_call(
        kernel,
        out_shape=jax.ShapeDtypeStruct((rows, cols), orig_dtype),
        grid_spec=pltpu.PrefetchScalarGridSpec(
            num_scalar_prefetch=0,
            grid=grid,
            in_specs=[
                pl.BlockSpec(memory_space=pltpu.MemorySpace.SMEM),   # a (1,1)
                pl.BlockSpec(memory_space=pltpu.MemorySpace.SMEM),   # b (1,1)
                pl.BlockSpec((tile_r, cols), lambda i: (i, 0)),      # X tile
            ],
            out_specs=pl.BlockSpec((tile_r, cols), lambda i: (i, 0)),
        ),
        compiler_params=pltpu.CompilerParams(
            dimension_semantics=("parallel",),   # shard rows across TCs on v7x
            vmem_limit_bytes=vmem_limit,
        ),
        cost_estimate=cost,
    )(a2, b2, x2d)

    out_flat = out2d.reshape(-1)
    if padded_n != n:
        out_flat = out_flat[:n]
    return out_flat.reshape(orig_shape)


if __name__ == "__main__":
    key = jax.random.PRNGKey(0)
    # Parameters init matching nn.Parameter(torch.tensor(1.0)).
    a = jnp.float32(1.0)
    b = jnp.float32(1.0)

    # Small 4D input (module is shape-agnostic); force the kernel path so the
    # pallas_call actually runs at this size.
    x = jax.random.normal(key, (2, 4, 16, 16), dtype=jnp.float32)
    out = jax.block_until_ready(exp_model_forward(x, a, b, min_kernel_elems=0))
    ref = a * jnp.exp(b * x)
    assert out.shape == x.shape and out.dtype == x.dtype
    assert jnp.allclose(out, ref, rtol=1e-6, atol=1e-6)

    # Ragged tiny size: exercises the 128-wide pad fallback, non-trivial scalars.
    a2, b2 = jnp.float32(0.5), jnp.float32(-1.25)
    x2 = jax.random.normal(jax.random.PRNGKey(1), (3, 5, 7), dtype=jnp.float32)
    out2 = jax.block_until_ready(exp_model_forward(x2, a2, b2, min_kernel_elems=0))
    ref2 = a2 * jnp.exp(b2 * x2)
    assert out2.shape == x2.shape and out2.dtype == x2.dtype
    assert jnp.allclose(out2, ref2, rtol=1e-6, atol=1e-6)

    # Mid-size input: multi-step grid with a ragged final row block (masked
    # writes) and no pad copy (512 divides the size).
    x3 = jax.random.normal(jax.random.PRNGKey(2), (4, 384, 515), dtype=jnp.float32)
    out3 = jax.block_until_ready(exp_model_forward(x3, a2, b2))
    ref3 = a2 * jnp.exp(b2 * x3)
    assert out3.shape == x3.shape and out3.dtype == x3.dtype
    assert jnp.allclose(out3, ref3, rtol=1e-6, atol=1e-6)

    print("KERNEL_OK")
</pallas_src>

<mosaic_0001>
module attributes {stable_mosaic.version = 11 : i64} {
  func.func @_exp_kernel(%arg0: i32, %arg1: memref<1x1xf32, #tpu.memory_space<smem>>, %arg2: memref<1x1xf32, #tpu.memory_space<smem>>, %arg3: memref<1x2048xf32, #tpu.memory_space<vmem>>, %arg4: memref<1x2048xf32, #tpu.memory_space<vmem>>) attributes {dimension_semantics = [#tpu.dimension_semantics<parallel>], iteration_bounds = array<i64: 1>, scalar_prefetch = 0 : i64, scratch_operands = 0 : i64, tpu.core_type = #tpu.core_type<tc>, window_params = [{transform_indices = @transform_0, window_bounds = array<i64: 1, 1>}, {transform_indices = @transform_1, window_bounds = array<i64: 1, 1>}, {transform_indices = @transform_2, window_bounds = array<i64: 1, 2048>}, {transform_indices = @transform_3, window_bounds = array<i64: 1, 2048>}]} {
    %c0 = arith.constant 0 : index
    %c0_0 = arith.constant 0 : index
    %0 = memref.load %arg1[%c0, %c0_0] : memref<1x1xf32, #tpu.memory_space<smem>>
    %c0_1 = arith.constant 0 : index
    %c0_2 = arith.constant 0 : index
    %1 = memref.load %arg2[%c0_1, %c0_2] : memref<1x1xf32, #tpu.memory_space<smem>>
    %c0_3 = arith.constant 0 : index
    %c0_4 = arith.constant 0 : index
    %2 = vector.load %arg3[%c0_3, %c0_4] : memref<1x2048xf32, #tpu.memory_space<vmem>>, vector<1x2048xf32>
    %3 = vector.broadcast %1 : f32 to vector<1x2048xf32>
    %4 = arith.mulf %3, %2 : vector<1x2048xf32>
    %5 = math.exp %4 : vector<1x2048xf32>
    %6 = vector.broadcast %0 : f32 to vector<1x2048xf32>
    %7 = arith.mulf %6, %5 : vector<1x2048xf32>
    %c0_5 = arith.constant 0 : index
    %c0_6 = arith.constant 0 : index
    %8 = vector.load %arg4[%c0_5, %c0_6] : memref<1x2048xf32, #tpu.memory_space<vmem>>, vector<1x2048xf32>
    tpu.vector_store %arg4[%c0_5, %c0_6], %7 {strides = array<i32>} : memref<1x2048xf32, #tpu.memory_space<vmem>>, vector<1x2048xf32>,
    return
  }
  func.func @transform_0(%arg0: i32) -> (i32, i32) {
    %c0_i32 = arith.constant 0 : i32
    %c0_i32_0 = arith.constant 0 : i32
    %c0_i32_1 = arith.constant 0 : i32
    return %c0_i32, %c0_i32_0 : i32, i32
  }
  func.func @transform_1(%arg0: i32) -> (i32, i32) {
    %c0_i32 = arith.constant 0 : i32
    %c0_i32_0 = arith.constant 0 : i32
    %c0_i32_1 = arith.constant 0 : i32
    return %c0_i32, %c0_i32_0 : i32, i32
  }
  func.func @transform_2(%arg0: i32) -> (i32, i32) {
    %c0_i32 = arith.constant 0 : i32
    %c0_i32_0 = arith.constant 0 : i32
    return %arg0, %c0_i32 : i32, i32
  }
  func.func @transform_3(%arg0: i32) -> (i32, i32) {
    %c0_i32 = arith.constant 0 : i32
    %c0_i32_0 = arith.constant 0 : i32
    return %arg0, %c0_i32 : i32, i32
  }
}

</mosaic_0001>

<llo_original>
// kernel: tpu_custom_call.1
$region0: #{tpu_custom_call.1}
  #allocation0 [shape = 'u32[]', space=smem, size = 0x4, offset = 0x4, fixed_abs, tag = 'smem constant byte address 0x4 - core index']
  #allocation1 [shape = 'u32[144,128]{1,0:T(1,128)}', space=vmem, size = 0x12000, scoped, tag = 'internal scratch']
  #allocation2 [shape = 'f32[1,1]{1,0:T(1,128)S(6)}', space=smem, size = 0x200, scoped, tag = 'scoped memory for tpu_custom_call.1']
  #allocation3 [shape = 'f32[1,1]{1,0:T(1,128)S(6)}', space=smem, size = 0x200, scoped, tag = 'scoped memory for tpu_custom_call.1']
  %s0 = inlined_call_operand.<no memory space> [shape: f32[1,1], index: 0, kind: input, shape index: {}]
  %s1 = inlined_call_operand.<no memory space> [shape: f32[1,1], index: 1, kind: input, shape index: {}]
  %s2 = inlined_call_operand.hbm [shape: f32[1,2048], index: 2, kind: input, shape index: {}]
  %s3 = inlined_call_operand.hbm [shape: f32[1,2048], index: 3, kind: output, shape index: {}]
  %s4 = sld [smem:[#allocation0]]
  $region26: #{tpu_custom_call.1} parent=0
    _
  %s6 = ssub.s32 1, %s4
  %s7 = scalar_select 0, %s6, %s4
  %8 = sst [smem:[#allocation2]] %s0
  %9 = sst [smem:[#allocation3]] %s1
  $region1: #{tpu_custom_call.1} parent=0
    #allocation4 [shape = 'u8[8192]{0}', space=vmem, size = 0x2000, scoped, tag = 'input window, operand 2, single buffered']
    #allocation5 [shape = 's32[1]{0}', space=sflag, size = 0x4, scoped, tag = 'scoped memory for tpu_custom_call.1']
    #allocation6 [shape = 's32[1]{0}', space=sflag, size = 0x4, scoped, tag = 'scoped memory for tpu_custom_call.1']
    #allocation7 [shape = 'u8[8192]{0}', space=vmem, size = 0x2000, scoped, tag = 'output window, operand 0, single buffered']
    %10 = vsyncpa [#allocation5], 0
    %11 = vsyncpa [#allocation6], 0
    // Predicated region
    $region2: #{tpu_custom_call.1} parent=1 // pred_check
      _
    $region3: #{tpu_custom_call.1} parent=1 // pred_check_branch
      %13 = sbr.rel (0) target = $region5
    $region4: #{tpu_custom_call.1} parent=1 // pred_region
      _
    $region5: #{tpu_custom_call.1} parent=1 // pred_fallthru
      _
    // Predicated region
    $region6: #{tpu_custom_call.1} parent=1 // pred_check
      _
    $region7: #{tpu_custom_call.1} parent=1 // pred_check_branch
      %15 = sbr.rel (0) target = $region9
    $region8: #{tpu_custom_call.1} parent=1 // pred_region
      _
    $region9: #{tpu_custom_call.1} parent=1 // pred_fallthru
      _
    // Predicated region
    $region10: #{tpu_custom_call.1} parent=1 // pred_check
      _
    $region11: #{tpu_custom_call.1} parent=1 // pred_check_branch
      %17 = sbr.rel (0) target = $region13
    $region12: #{tpu_custom_call.1} parent=1 // pred_region
      %s19 = ssub.s32 256, 256
      %20 = vsyncadd [#allocation5], %s19
      %s22 = sshll.u32 [#allocation4], 4
      %s23 = int_to_ptr.vmem [resolvable:$true] %s22
      %25 = dma.hbm_to_vmem [thread:$0]  %s2, 256, %s23, [#allocation5]
    $region13: #{tpu_custom_call.1} parent=1 // pred_fallthru
      _
    // Predicated region
    $region14: #{tpu_custom_call.1} parent=1 // pred_check
      _
    $region15: #{tpu_custom_call.1} parent=1 // pred_check_branch
      %27 = sbr.rel (0) target = $region17
    $region16: #{tpu_custom_call.1} parent=1 // pred_region
      %28 = dma.done [#allocation5], 256
    $region17: #{tpu_custom_call.1} parent=1 // pred_fallthru
      _
    %s29 = sld [smem:[#allocation2]]
    %s30 = sld [smem:[#allocation3]]
    %v31 = vld [vmem:[#allocation4] sm:$0xff]
    %v32 = vld [vmem:[#allocation4 + $0x8] sm:$0xff]
    %v33 = vstv %s30
    %v34 = vmul.f32 %v33, %v31
    %v35 = vmul.f32 %v33, %v32
    %v36 = vmul.f32 %v34, 1.442695
    %v37 = vpow.pop %v36
    %v38 = vmul.f32 %v35, 1.442695
    %v39 = vpow.pop %v38
    %v40 = vstv %s29
    %v41 = vmul.f32 %v40, %v37
    %v42 = vmul.f32 %v40, %v39
    %43 = vst [vmem:[#allocation7] sm:$0xff] %v41
    %44 = vst [vmem:[#allocation7 + $0x8] sm:$0xff] %v42
    // Predicated region
    $region18: #{tpu_custom_call.1} parent=1 // pred_check
      _
    $region19: #{tpu_custom_call.1} parent=1 // pred_check_branch
      %46 = sbr.rel (0) target = $region21
    $region20: #{tpu_custom_call.1} parent=1 // pred_region
      %s48 = ssub.s32 256, 256
      %49 = vsyncadd [#allocation6], %s48
      %s51 = sshll.u32 [#allocation7], 4
      %s52 = int_to_ptr.vmem [resolvable:$true] %s51
      %54 = dma.vmem_to_hbm [thread:$0]  %s52, 256, %s3, [#allocation6]
    $region21: #{tpu_custom_call.1} parent=1 // pred_fallthru
      _
    // Predicated region
    $region22: #{tpu_custom_call.1} parent=1 // pred_check
      _
    $region23: #{tpu_custom_call.1} parent=1 // pred_check_branch
      %56 = sbr.rel (0) target = $region25
    $region24: #{tpu_custom_call.1} parent=1 // pred_region
      %57 = dma.done [#allocation6], 256
    $region25: #{tpu_custom_call.1} parent=1 // pred_fallthru
      _
    %58 = vsyncpa [#allocation5], 1
    %59 = vsyncpa [#allocation6], 1

</llo_original>
